<compile_context>
chip_gen: v7x
topology: tpu7x:2x2x1
jax: 0.10.0
libtpu: 0.0.40
codegen_flags: <defaults>
</compile_context>

<pallas_src>
import functools

import jax
import jax.numpy as jnp
from jax.experimental import pallas as pl
from jax.experimental.pallas import tpu as pltpu


# ---------------------------------------------------------------------------
# Kernel 1: hoisted input projection for both directions (one MXU matmul).
#   gates_all = x_flat @ [W_ih_f^T | W_ih_r^T] + [b_f | b_r]   -> (T*B, 8H)
# ---------------------------------------------------------------------------
def _proj_kernel(x_ref, w_ref, b_ref, o_ref):
    o_ref[...] = (jnp.dot(x_ref[...], w_ref[...],
                          preferred_element_type=jnp.float32) + b_ref[...])


def input_projection(x_flat, w_ih, bias):
    # TODO(synk): for production-sized T*B, tile the M dimension over a
    # "parallel" grid; at T*B=16 a single block is optimal.
    M, K = x_flat.shape
    N = w_ih.shape[1]
    return pl.pallas_call(
        _proj_kernel,
        out_shape=jax.ShapeDtypeStruct((M, N), jnp.float32),
        in_specs=[
            pl.BlockSpec((M, K), lambda: (0, 0)),
            pl.BlockSpec((K, N), lambda: (0, 0)),
            pl.BlockSpec((1, N), lambda: (0, 0)),
        ],
        out_specs=pl.BlockSpec((M, N), lambda: (0, 0)),
    )(x_flat, w_ih, bias)


# ---------------------------------------------------------------------------
# Kernel 2: fused bidirectional recurrence.
#   grid = (direction, time-chunk); direction axis is "parallel" (independent
#   serial chains -> 2 TCs on v7x), time-chunk axis is "arbitrary" (carries
#   the recurrent state in VMEM scratch).
# ---------------------------------------------------------------------------
def _bilstm_kernel(gates_ref, whh_ref, out_ref, h_scr, c_scr, *, hidden, chunk):
    d = pl.program_id(0)          # 0 = forward in time, 1 = backward
    cidx = pl.program_id(1)       # chunk index within this direction

    @pl.when(cidx == 0)
    def _():
        h_scr[...] = jnp.zeros_like(h_scr)   # h0 = 0 (matches module)
        c_scr[...] = jnp.zeros_like(c_scr)   # c0 = 0 (matches module)

    whh = whh_ref[...]            # (H, 4H) recurrent weights of this direction

    def step(s, carry):
        h, c = carry
        # within-chunk time index: forward walks 0..chunk-1, backward chunk-1..0
        ts = s * (1 - d) + (chunk - 1 - s) * d
        g = gates_ref[ts] + jnp.dot(h, whh,
                                    preferred_element_type=jnp.float32)  # (B, 4H)
        # full-width activations on the 4H lane slab, then slice (i, f, g, o)
        sig = jax.nn.sigmoid(g)
        th = jnp.tanh(g)
        i_g = sig[:, 0 * hidden:1 * hidden]
        f_g = sig[:, 1 * hidden:2 * hidden]
        o_g = sig[:, 3 * hidden:4 * hidden]
        g_g = th[:, 2 * hidden:3 * hidden]
        c_new = f_g * c + i_g * g_g
        h_new = o_g * jnp.tanh(c_new)
        out_ref[ts] = h_new
        return h_new, c_new

    h_fin, c_fin = jax.lax.fori_loop(0, chunk, step,
                                     (h_scr[...], c_scr[...]), unroll=True)
    h_scr[...] = h_fin
    c_scr[...] = c_fin


def _pick_chunk(T, max_chunk=16):
    for c in range(min(T, max_chunk), 0, -1):
        if T % c == 0:
            return c
    return 1


def bilstm_recurrence(gates, w_hh, *, hidden, chunk):
    """gates: (T, B, 8H) precomputed x@W_ih + b for both directions.
       w_hh : (H, 8H). Returns (2, T, B, H) hidden states (fwd, bwd)."""
    T, B, H8 = gates.shape
    assert H8 == 8 * hidden
    assert T % chunk == 0
    n_chunks = T // chunk

    def tb(d, c):
        # time-block index: forward walks chunks left->right, backward right->left
        return c * (1 - d) + (n_chunks - 1 - c) * d

    kernel = functools.partial(_bilstm_kernel, hidden=hidden, chunk=chunk)

    return pl.pallas_call(
        kernel,
        out_shape=jax.ShapeDtypeStruct((2, T, B, hidden), jnp.float32),
        grid_spec=pltpu.PrefetchScalarGridSpec(
            num_scalar_prefetch=0,
            grid=(2, n_chunks),
            in_specs=[
                # this direction's precomputed input gates for this time chunk
                pl.BlockSpec((chunk, B, 4 * hidden),
                             lambda d, c: (tb(d, c), 0, d)),
                # this direction's recurrent weights (constant across chunks)
                pl.BlockSpec((hidden, 4 * hidden), lambda d, c: (0, d)),
            ],
            # direction plane of the output; VMEM-resident for the whole chunk
            out_specs=pl.BlockSpec((None, chunk, B, hidden),
                                   lambda d, c: (d, tb(d, c), 0, 0)),
            scratch_shapes=[
                pltpu.VMEM((B, hidden), jnp.float32),   # h state
                pltpu.VMEM((B, hidden), jnp.float32),   # c state
            ],
        ),
        compiler_params=pltpu.CompilerParams(
            dimension_semantics=("parallel", "arbitrary")),
    )(gates, w_hh)


# ---------------------------------------------------------------------------
# Kernel 3: embedding Linear(2H -> nOut) with the fwd/bwd concat fused in
# (two half-matmuls) and a lane-padded (128) output for dense stores.
# ---------------------------------------------------------------------------
def _embed_kernel(rec_ref, w_ref, b_ref, o_ref, *, hidden):
    fwd = rec_ref[0]                              # (M, H)
    bwd = rec_ref[1]                              # (M, H)
    w = w_ref[...]                                # (2H, Npad)
    o_ref[...] = (jnp.dot(fwd, w[:hidden, :],
                          preferred_element_type=jnp.float32)
                  + jnp.dot(bwd, w[hidden:, :],
                            preferred_element_type=jnp.float32)
                  + b_ref[...])


def embedding(rec, w_emb_pad, b_emb_pad, *, hidden):
    _, M, _ = rec.shape
    n_pad = w_emb_pad.shape[1]
    kernel = functools.partial(_embed_kernel, hidden=hidden)
    return pl.pallas_call(
        kernel,
        out_shape=jax.ShapeDtypeStruct((M, n_pad), jnp.float32),
        in_specs=[
            pl.BlockSpec((2, M, hidden), lambda: (0, 0, 0)),
            pl.BlockSpec((2 * hidden, n_pad), lambda: (0, 0)),
            pl.BlockSpec((1, n_pad), lambda: (0, 0)),
        ],
        out_specs=pl.BlockSpec((M, n_pad), lambda: (0, 0)),
    )(rec, w_emb_pad, b_emb_pad)


# ---------------------------------------------------------------------------
# Full module forward
# ---------------------------------------------------------------------------
def bidirectional_lstm_forward(x, params, *, n_out):
    T, B, n_in = x.shape
    H = params["w_hh"].shape[0]

    # 1) hoisted input projection (both directions in one matmul): (T*B, 8H)
    gates = input_projection(x.reshape(T * B, n_in), params["w_ih"], params["b"])
    gates = gates.reshape(T, B, 8 * H)

    # 2) fused bidirectional recurrence -> (2, T, B, H)
    chunk = _pick_chunk(T)
    rec = bilstm_recurrence(gates, params["w_hh"], hidden=H, chunk=chunk)

    # 3) embedding (concat fused into the matmul, lane-padded output)
    out = embedding(rec.reshape(2, T * B, H),
                    params["w_emb_pad"], params["b_emb_pad"], hidden=H)
    return out[:, :n_out].reshape(T, B, n_out)


# ---------------------------------------------------------------------------
# Pure-JAX reference (lax.scan) for a correctness check
# ---------------------------------------------------------------------------
def _ref_direction(x, w_ih, w_hh, bias, H, reverse):
    def step(carry, x_t):
        h, c = carry
        gates = x_t @ w_ih + h @ w_hh + bias
        i = jax.nn.sigmoid(gates[:, 0 * H:1 * H])
        f = jax.nn.sigmoid(gates[:, 1 * H:2 * H])
        g = jnp.tanh(gates[:, 2 * H:3 * H])
        o = jax.nn.sigmoid(gates[:, 3 * H:4 * H])
        c_new = f * c + i * g
        h_new = o * jnp.tanh(c_new)
        return (h_new, c_new), h_new

    B = x.shape[1]
    xs = x[::-1] if reverse else x
    init = (jnp.zeros((B, H), jnp.float32), jnp.zeros((B, H), jnp.float32))
    _, hs = jax.lax.scan(step, init, xs)
    return hs[::-1] if reverse else hs


def reference_forward(x, params, H, n_out):
    T, B, _ = x.shape
    w_ih_f, w_ih_r = params["w_ih"][:, :4 * H], params["w_ih"][:, 4 * H:]
    w_hh_f, w_hh_r = params["w_hh"][:, :4 * H], params["w_hh"][:, 4 * H:]
    b_f, b_r = params["b"][0, :4 * H], params["b"][0, 4 * H:]
    hf = _ref_direction(x, w_ih_f, w_hh_f, b_f, H, False)
    hb = _ref_direction(x, w_ih_r, w_hh_r, b_r, H, True)
    rec = jnp.concatenate([hf, hb], axis=-1).reshape(T * B, -1)
    out = rec @ params["w_emb_pad"][:, :n_out] + params["b_emb_pad"][0, :n_out]
    return out.reshape(T, B, n_out)


# ---------------------------------------------------------------------------
if __name__ == "__main__":
    # Small shapes consistent with the module: x is (T, B, nIn)
    T, B, nIn, H, nOut = 8, 2, 16, 32, 10
    NPAD = 128   # lane-dense embedding output width (nOut padded to 128)

    key = jax.random.PRNGKey(0)
    keys = jax.random.split(key, 10)
    s = 1.0 / jnp.sqrt(H)

    w_emb = jax.random.uniform(keys[6], (2 * H, nOut), jnp.float32, -s, s)
    b_emb = jax.random.uniform(keys[7], (nOut,), jnp.float32, -s, s)

    params = {
        # [W_ih_f^T | W_ih_r^T]  (nIn, 8H)
        "w_ih": jax.random.uniform(keys[0], (nIn, 8 * H), jnp.float32, -s, s),
        # [W_hh_f^T | W_hh_r^T]  (H, 8H)
        "w_hh": jax.random.uniform(keys[1], (H, 8 * H), jnp.float32, -s, s),
        # fused (b_ih + b_hh) per direction  (1, 8H)
        "b": jax.random.uniform(keys[2], (1, 8 * H), jnp.float32, -s, s),
        # lane-padded embedding Linear(2H -> nOut), stored transposed
        "w_emb_pad": jnp.zeros((2 * H, NPAD), jnp.float32).at[:, :nOut].set(w_emb),
        "b_emb_pad": jnp.zeros((1, NPAD), jnp.float32).at[0, :nOut].set(b_emb),
    }

    x = jax.random.normal(keys[8], (T, B, nIn), jnp.float32)

    out = jax.block_until_ready(bidirectional_lstm_forward(x, params, n_out=nOut))
    ref = jax.block_until_ready(reference_forward(x, params, H, nOut))

    assert out.shape == (T, B, nOut), out.shape
    err = float(jnp.max(jnp.abs(out - ref)))
    assert jnp.allclose(out, ref, atol=2e-4, rtol=2e-4), err

    print("KERNEL_OK")
</pallas_src>

<mosaic_0001>
module attributes {stable_mosaic.version = 11 : i64} {
  func.func @_proj_kernel(%arg0: memref<16x16xf32, #tpu.memory_space<vmem>>, %arg1: memref<16x256xf32, #tpu.memory_space<vmem>>, %arg2: memref<1x256xf32, #tpu.memory_space<vmem>>, %arg3: memref<16x256xf32, #tpu.memory_space<vmem>>) attributes {dimension_semantics = [], scalar_prefetch = 0 : i64, scratch_operands = 0 : i64, tpu.core_type = #tpu.core_type<tc>} {
    %c0 = arith.constant 0 : index
    %c0_0 = arith.constant 0 : index
    %0 = vector.load %arg0[%c0, %c0_0] : memref<16x16xf32, #tpu.memory_space<vmem>>, vector<16x16xf32>
    %c0_1 = arith.constant 0 : index
    %c0_2 = arith.constant 0 : index
    %1 = vector.load %arg1[%c0_1, %c0_2] : memref<16x256xf32, #tpu.memory_space<vmem>>, vector<16x256xf32>
    %cst = arith.constant dense<0.000000e+00> : vector<16x256xf32>
    %2 = tpu.matmul %0, %1, %cst {dimension_numbers = #tpu.dot_dimension_numbers<[1], [0], [0], [1], [0, 0, 1, 1], [], []>} : vector<16x16xf32>, vector<16x256xf32>, vector<16x256xf32> -> vector<16x256xf32>
    %c0_3 = arith.constant 0 : index
    %c0_4 = arith.constant 0 : index
    %3 = vector.load %arg2[%c0_3, %c0_4] : memref<1x256xf32, #tpu.memory_space<vmem>>, vector<1x256xf32>
    %4 = vector.broadcast %3 : vector<1x256xf32> to vector<16x256xf32>
    %5 = arith.addf %2, %4 : vector<16x256xf32>
    %c0_5 = arith.constant 0 : index
    %c0_6 = arith.constant 0 : index
    %6 = vector.load %arg3[%c0_5, %c0_6] : memref<16x256xf32, #tpu.memory_space<vmem>>, vector<16x256xf32>
    tpu.vector_store %arg3[%c0_5, %c0_6], %5 {strides = array<i32>} : memref<16x256xf32, #tpu.memory_space<vmem>>, vector<16x256xf32>,
    return
  }
}

</mosaic_0001>

<llo_original>
// kernel: tpu_custom_call.1
$region0: #{tpu_custom_call.1}
  #allocation0 [shape = 'u32[]', space=smem, size = 0x4, offset = 0x4, fixed_abs, tag = 'smem constant byte address 0x4 - core index']
  #allocation1 [shape = 'u32[144,128]{1,0:T(1,128)}', space=vmem, size = 0x12000, scoped, tag = 'internal scratch']
  %s0 = inlined_call_operand.hbm [shape: f32[16,16], index: 0, kind: input, shape index: {}]
  %s1 = inlined_call_operand.hbm [shape: f32[16,256], index: 1, kind: input, shape index: {}]
  %s2 = inlined_call_operand.vmem [shape: f32[1,256], index: 2, kind: input, shape index: {}]
  %s3 = inlined_call_operand.hbm [shape: f32[16,256], index: 3, kind: output, shape index: {}]
  %s4 = sld [smem:[#allocation0]]
  $region30: #{tpu_custom_call.1} parent=0
    _
  %s6 = ssub.s32 1, %s4
  %s7 = scalar_select 0, %s6, %s4
  $region1: #{tpu_custom_call.1} parent=0
    #allocation2 [shape = 'u8[8192]{0}', space=vmem, size = 0x2000, scoped, tag = 'input window, operand 0, single buffered']
    #allocation3 [shape = 's32[1]{0}', space=sflag, size = 0x4, scoped, tag = 'scoped memory for tpu_custom_call.1']
    #allocation4 [shape = 's32[1]{0}', space=sflag, size = 0x4, scoped, tag = 'scoped memory for tpu_custom_call.1']
    #allocation5 [shape = 'u8[16384]{0}', space=vmem, size = 0x4000, scoped, tag = 'input window, operand 1, single buffered']
    #allocation6 [shape = 's32[1]{0}', space=sflag, size = 0x4, scoped, tag = 'scoped memory for tpu_custom_call.1']
    #allocation7 [shape = 'u8[16384]{0}', space=vmem, size = 0x4000, scoped, tag = 'output window, operand 0, single buffered']
    %8 = vsyncpa [#allocation3], 0
    %9 = vsyncpa [#allocation6], 0
    %10 = vsyncpa [#allocation4], 0
    // Predicated region
    $region2: #{tpu_custom_call.1} parent=1 // pred_check
      _
    $region3: #{tpu_custom_call.1} parent=1 // pred_check_branch
      %12 = sbr.rel (0) target = $region5
    $region4: #{tpu_custom_call.1} parent=1 // pred_region
      %s14 = ssub.s32 256, 256
      %15 = vsyncadd [#allocation3], %s14
      %s16 = sshll.u32 [#allocation2], 4
      %s17 = int_to_ptr.vmem [resolvable:$true] %s16
      %22 = dma.hbm_to_vmem [thread:$0]  %s0, 256, %s17, [#allocation3], 128, 128, 8
    $region5: #{tpu_custom_call.1} parent=1 // pred_fallthru
      _
    // Predicated region
    $region6: #{tpu_custom_call.1} parent=1 // pred_check
      _
    $region7: #{tpu_custom_call.1} parent=1 // pred_check_branch
      %24 = sbr.rel (0) target = $region9
    $region8: #{tpu_custom_call.1} parent=1 // pred_region
      %s26 = ssub.s32 512, 512
      %27 = vsyncadd [#allocation6], %s26
      %s28 = sshll.u32 [#allocation5], 4
      %s29 = int_to_ptr.vmem [resolvable:$true] %s28
      %34 = dma.hbm_to_vmem [thread:$0]  %s1, 512, %s29, [#allocation6], 256, 256, 16
    $region9: #{tpu_custom_call.1} parent=1 // pred_fallthru
      _
    // Predicated region
    $region10: #{tpu_custom_call.1} parent=1 // pred_check
      _
    $region11: #{tpu_custom_call.1} parent=1 // pred_check_branch
      %36 = sbr.rel (0) target = $region13
    $region12: #{tpu_custom_call.1} parent=1 // pred_region
      _
    $region13: #{tpu_custom_call.1} parent=1 // pred_fallthru
      _
    // Predicated region
    $region14: #{tpu_custom_call.1} parent=1 // pred_check
      _
    $region15: #{tpu_custom_call.1} parent=1 // pred_check_branch
      %38 = sbr.rel (0) target = $region17
    $region16: #{tpu_custom_call.1} parent=1 // pred_region
      %39 = dma.done [#allocation3], 256
    $region17: #{tpu_custom_call.1} parent=1 // pred_fallthru
      _
    // Predicated region
    $region18: #{tpu_custom_call.1} parent=1 // pred_check
      _
    $region19: #{tpu_custom_call.1} parent=1 // pred_check_branch
      %41 = sbr.rel (0) target = $region21
    $region20: #{tpu_custom_call.1} parent=1 // pred_region
      %42 = dma.done [#allocation6], 512
    $region21: #{tpu_custom_call.1} parent=1 // pred_fallthru
      _
    %v43 = vld [vmem:[#allocation2] sm:$0xff]
    %v44 = vld [vmem:[#allocation2 + $0x8] sm:$0xff]
    %v45 = vld [vmem:[#allocation5] sm:$0xff]
    %v46 = vld [vmem:[#allocation5 + $0x8] sm:$0xff]
    %v47 = vld [vmem:[#allocation5 + $0x10] sm:$0xff]
    %v48 = vld [vmem:[#allocation5 + $0x18] sm:$0xff]
    %v49 = vld [vmem:[%s2] sm:$0x3]
    %v51 = vlaneseq
    %v52 = vshrl.u32 %v51, 7
    %v53 = vsub.s32 0, %v52
    %v54 = vrot.slane %v49, %v53
    %v55 = vlaneseq
    %v56 = vshrl.u32 %v55, 7
    %v57 = vsub.s32 1, %v56
    %v58 = vrot.slane %v49, %v57
    %vm61 = vcmask 130048
    %v63 = vsel %vm61, %v43, 0
    %v66 = vsel %vm61, %v44, 0
    %68 = vmatprep.subr.mxu0 %v46
    %69 = vmatpush1.msra.mxu0 %v45
    %70 = vmatprep.subr.mxu0 %v48
    %71 = vmatpush1.msra.mxu0 %v47
    %72 = vmatprep.subr.mxu0 0.0
    %73 = vmatpush1.msra.mxu0 0.0
    %74 = vmatprep.subr.mxu0 0.0
    %75 = vmatpush1.msra.mxu0 0.0
    %76 = vmatprep.subr.mxu0 0.0
    %77 = vmatpush1.msra.mxu0 0.0
    %78 = vmatprep.subr.mxu0 0.0
    %79 = vmatpush1.msra.mxu0 0.0
    %80 = vmatprep.subr.mxu0 0.0
    %81 = vmatpush1.msra.mxu0 0.0
    %82 = vmatprep.subr.mxu0 0.0
    %83 = vmatpush1.msra.mxu0 0.0
    %84 = vmatprep.subr.mxu0 0.0
    %85 = vmatpush1.msra.mxu0 0.0
    %86 = vmatprep.subr.mxu0 0.0
    %87 = vmatpush1.msra.mxu0 0.0
    %88 = vmatprep.subr.mxu0 0.0
    %89 = vmatpush1.msra.mxu0 0.0
    %90 = vmatprep.subr.mxu0 0.0
    %91 = vmatpush1.msra.mxu0 0.0
    %92 = vmatprep.subr.mxu0 0.0
    %93 = vmatpush1.msra.mxu0 0.0
    %94 = vmatprep.subr.mxu0 0.0
    %95 = vmatpush1.msra.mxu0 0.0
    %96 = vmatprep.subr.mxu0 0.0
    %97 = vmatpush1.msra.mxu0 0.0
    %98 = vmatprep.subr.mxu0 0.0
    %99 = vmatpush1.msra.mxu0 0.0
    %100 = vmatprep.subr.mxu0 0.0
    %101 = vmatpush1.msra.mxu0 0.0
    %102 = vmatprep.subr.mxu0 0.0
    %103 = vmatpush1.msra.mxu0 0.0
    %104 = vmatprep.subr.mxu0 0.0
    %105 = vmatpush1.msra.mxu0 0.0
    %106 = vmatprep.subr.mxu0 0.0
    %107 = vmatpush1.msra.mxu0 0.0
    %108 = vmatprep.subr.mxu0 0.0
    %109 = vmatpush1.msra.mxu0 0.0
    %110 = vmatprep.subr.mxu0 0.0
    %111 = vmatpush1.msra.mxu0 0.0
    %112 = vmatprep.subr.mxu0 0.0
    %113 = vmatpush1.msra.mxu0 0.0
    %114 = vmatprep.subr.mxu0 0.0
    %115 = vmatpush1.msra.mxu0 0.0
    %116 = vmatprep.subr.mxu0 0.0
    %117 = vmatpush1.msra.mxu0 0.0
    %118 = vmatprep.subr.mxu0 0.0
    %119 = vmatpush1.msra.mxu0 0.0
    %120 = vmatprep.subr.mxu0 0.0
    %121 = vmatpush1.msra.mxu0 0.0
    %122 = vmatprep.subr.mxu0 0.0
    %123 = vmatpush1.msra.mxu0 0.0
    %124 = vmatprep.subr.mxu0 0.0
    %125 = vmatpush1.msra.mxu0 0.0
    %126 = vmatprep.subr.mxu0 0.0
    %127 = vmatpush1.msra.mxu0 0.0
    %128 = vmatprep.subr.mxu0 0.0
    %129 = vmatpush1.msra.mxu0 0.0
    %130 = vmatprep.subr.mxu0 0.0
    %131 = vmatpush1.msra.mxu0 0.0
    %132 = vmatprep.mubr.f32.mxu0 0.0
    %133 = vmatmul.mubr.f32.gmra.mrb[0].mxu0 %v63
    %v134 = vpop.f32.mrb[0].mxu0
    %v135 = vadd.f32 %v54, %v134
    %v136 = vpop.f32.mrb[0].mxu0
    %v137 = vadd.f32 %v58, %v136
    %138 = vmatprep.mubr.f32.mxu0 0.0
    %139 = vmatmul.mubr.f32.gmra.mrb[0].mxu0 %v66
    %v140 = vpop.f32.mrb[0].mxu0
    %v141 = vadd.f32 %v54, %v140
    %v142 = vpop.f32.mrb[0].mxu0
    %v143 = vadd.f32 %v58, %v142
    %144 = vdwg.mxu0
    %145 = vst [vmem:[#allocation7] sm:$0xff] %v135
    %146 = vst [vmem:[#allocation7 + $0x8] sm:$0xff] %v137
    %147 = vst [vmem:[#allocation7 + $0x10] sm:$0xff] %v141
    %148 = vst [vmem:[#allocation7 + $0x18] sm:$0xff] %v143
    // Predicated region
    $region22: #{tpu_custom_call.1} parent=1 // pred_check
      _
    $region23: #{tpu_custom_call.1} parent=1 // pred_check_branch
      %150 = sbr.rel (0) target = $region25
    $region24: #{tpu_custom_call.1} parent=1 // pred_region
      %s152 = ssub.s32 512, 512
      %153 = vsyncadd [#allocation4], %s152
      %s154 = sshll.u32 [#allocation7], 4
      %s155 = int_to_ptr.vmem [resolvable:$true] %s154
      %160 = dma.vmem_to_hbm [thread:$0]  %s155, 512, %s3, [#allocation4], 256, 256, 16
    $region25: #{tpu_custom_call.1} parent=1 // pred_fallthru
      _
    // Predicated region
    $region26: #{tpu_custom_call.1} parent=1 // pred_check
      _
    $region27: #{tpu_custom_call.1} parent=1 // pred_check_branch
      %162 = sbr.rel (0) target = $region29
    $region28: #{tpu_custom_call.1} parent=1 // pred_region
      %163 = dma.done [#allocation4], 512
    $region29: #{tpu_custom_call.1} parent=1 // pred_fallthru
      _
    %164 = vsyncpa [#allocation3], 1
    %165 = vsyncpa [#allocation6], 1
    %166 = vsyncpa [#allocation4], 1

</llo_original>
